<compile_context>
chip_gen: v7x
topology: tpu7x:2x2x1
jax: 0.10.0
libtpu: 0.0.40
codegen_flags: <defaults>
</compile_context>

<pallas_src>
import functools

import jax
import jax.numpy as jnp
from jax import lax
from jax.experimental import pallas as pl
from jax.experimental.pallas import tpu as pltpu


def _round_up(n, m):
    return ((n + m - 1) // m) * m


def _fused_mlp_kernel(x_ref, w_ref, b_ref, g_ref, be_ref, o_ref, *, dims, eps):
    """Whole-MLP kernel for one batch tile.

    x_ref : (TB, Dpad)          padded activations (zeros beyond dims[0])
    w_ref : (L, Dpad, Dpad)     padded, pre-transposed weights (in, out)
    b_ref/g_ref/be_ref : (L, 1, Dpad)  padded bias / gamma / beta (pad = 0)
    o_ref : (TB, Dpad)          padded output (columns >= dims[-1] are 0)
    dims  : (Din, H1, H2, ...)  REAL feature sizes, static.
    """
    h = x_ref[...].astype(jnp.float32)
    num_layers = len(dims) - 1

    # Column-index iota hoisted out of the layer loop (same shape every layer).
    col = lax.broadcasted_iota(jnp.int32, h.shape, 1)

    for l in range(num_layers):
        d_out = dims[l + 1]

        # Linear (MXU) + bias.  Padded W rows/cols and padded bias are zero, so
        # padded columns of y are exactly zero here.
        y = jnp.dot(h, w_ref[l], preferred_element_type=jnp.float32) + b_ref[l]

        # ReLU (VPU).
        y = jnp.maximum(y, 0.0)

        # LayerNorm over the REAL d_out features (biased variance, torch style),
        # masking out the lane-padding columns.
        mask = col < d_out
        y_m = jnp.where(mask, y, 0.0)
        mean = jnp.sum(y_m, axis=-1, keepdims=True) * (1.0 / d_out)
        centered = jnp.where(mask, y - mean, 0.0)
        var = jnp.sum(centered * centered, axis=-1, keepdims=True) * (1.0 / d_out)
        inv = lax.rsqrt(var + eps)

        # gamma/beta are zero in padded columns -> padded output columns are 0,
        # so the next layer's (zero-padded-row) matmul stays exact.
        h = (centered * inv) * g_ref[l] + be_ref[l]

    o_ref[...] = h.astype(o_ref.dtype)


def mlp_forward(x, params, *, eps=1e-5, max_batch_tile=256):
    """Fused forward of the whole MLP in a single pallas_call.

    x:      (B, Din) float32
    params: list of (w_t (Din_l, Dout_l), b (Dout_l,), gamma (Dout_l,), beta (Dout_l,))
    """
    B, d_in = x.shape
    dims = (d_in,) + tuple(w_t.shape[1] for (w_t, _, _, _) in params)
    num_layers = len(params)

    # One common lane-dense padded width for every layer.
    d_pad = _round_up(max(dims), 128)

    # Batch tile: multiple of 8, capped for VMEM friendliness at large B.
    b8 = _round_up(B, 8)
    tb = min(max_batch_tile, b8)
    b_pad = _round_up(B, tb)

    # --- Pad & stack parameters (zeros outside the real extents). -----------
    w_stack = jnp.zeros((num_layers, d_pad, d_pad), dtype=jnp.float32)
    b_stack = jnp.zeros((num_layers, 1, d_pad), dtype=jnp.float32)
    g_stack = jnp.zeros((num_layers, 1, d_pad), dtype=jnp.float32)  # pad gamma with 0!
    be_stack = jnp.zeros((num_layers, 1, d_pad), dtype=jnp.float32)
    for l, (w_t, b, gamma, beta) in enumerate(params):
        din_l, dout_l = w_t.shape
        w_stack = w_stack.at[l, :din_l, :dout_l].set(w_t.astype(jnp.float32))
        b_stack = b_stack.at[l, 0, :dout_l].set(b.astype(jnp.float32))
        g_stack = g_stack.at[l, 0, :dout_l].set(gamma.astype(jnp.float32))
        be_stack = be_stack.at[l, 0, :dout_l].set(beta.astype(jnp.float32))

    # Pad the input (zero rows / zero feature columns contribute nothing).
    x_pad = jnp.zeros((b_pad, d_pad), dtype=jnp.float32)
    x_pad = x_pad.at[:B, :d_in].set(x.astype(jnp.float32))

    kernel = functools.partial(_fused_mlp_kernel, dims=dims, eps=eps)

    grid = (b_pad // tb,)
    param_bytes = 4 * (w_stack.size + b_stack.size + g_stack.size + be_stack.size)
    cost = pl.CostEstimate(
        flops=2 * b_pad * d_pad * d_pad * num_layers + 10 * b_pad * d_pad * num_layers,
        transcendentals=b_pad * num_layers,
        bytes_accessed=4 * (x_pad.size + b_pad * d_pad) + param_bytes,
    )

    out_pad = pl.pallas_call(
        kernel,
        out_shape=jax.ShapeDtypeStruct((b_pad, d_pad), x.dtype),
        grid_spec=pl.GridSpec(
            grid=grid,
            in_specs=[
                pl.BlockSpec((tb, d_pad), lambda i: (i, 0)),
                # Constant block index -> weights stay resident across the grid.
                pl.BlockSpec((num_layers, d_pad, d_pad), lambda i: (0, 0, 0)),
                pl.BlockSpec((num_layers, 1, d_pad), lambda i: (0, 0, 0)),
                pl.BlockSpec((num_layers, 1, d_pad), lambda i: (0, 0, 0)),
                pl.BlockSpec((num_layers, 1, d_pad), lambda i: (0, 0, 0)),
            ],
            out_specs=pl.BlockSpec((tb, d_pad), lambda i: (i, 0)),
        ),
        compiler_params=pltpu.CompilerParams(
            dimension_semantics=("parallel",),  # shard batch tiles across TCs (v7x)
        ),
        cost_estimate=cost,
    )(x_pad, w_stack, b_stack, g_stack, be_stack)

    return out_pad[:B, :dims[-1]]


def init_params(key, in_dim, sizes):
    """Deterministic parameter init (synthetic, mimics Linear/LayerNorm shapes)."""
    params = []
    prev = in_dim
    for h in sizes:
        key, kw, kb = jax.random.split(key, 3)
        # nn.Linear weight is (out, in); store transposed (in, out) for the kernel.
        w = jax.random.normal(kw, (h, prev), dtype=jnp.float32) * (1.0 / jnp.sqrt(prev))
        b = jax.random.normal(kb, (h,), dtype=jnp.float32) * 0.01
        gamma = jnp.ones((h,), dtype=jnp.float32)   # nn.LayerNorm default weight
        beta = jnp.zeros((h,), dtype=jnp.float32)   # nn.LayerNorm default bias
        params.append((w.T, b, gamma, beta))
        prev = h
    return params


def mlp_reference(x, params, eps=1e-5):
    """Pure-JAX reference of the PyTorch forward."""
    for (w_t, b, gamma, beta) in params:
        y = jnp.maximum(x @ w_t + b, 0.0)
        mean = jnp.mean(y, axis=-1, keepdims=True)
        var = jnp.mean((y - mean) ** 2, axis=-1, keepdims=True)
        x = (y - mean) / jnp.sqrt(var + eps) * gamma + beta
    return x


if __name__ == "__main__":
    key = jax.random.PRNGKey(0)
    key, kx = jax.random.split(key)

    batch = 8
    obs_dim = 16                 # spaces.flatdim(env.observation_space)
    sizes = [32, 64]             # config['nn.sizes']

    x = jax.random.normal(kx, (batch, obs_dim), dtype=jnp.float32)
    params = init_params(key, obs_dim, sizes)

    out = jax.block_until_ready(mlp_forward(x, params))
    ref = mlp_reference(x, params)

    assert out.shape == (batch, sizes[-1])
    assert jnp.allclose(out, ref, atol=1e-4, rtol=1e-4), "mismatch vs reference"

    print("KERNEL_OK")
</pallas_src>

<mosaic_0001>
module attributes {stable_mosaic.version = 11 : i64} {
  func.func @_fused_mlp_kernel(%arg0: i32, %arg1: memref<8x128xf32, #tpu.memory_space<vmem>>, %arg2: memref<2x128x128xf32, #tpu.memory_space<vmem>>, %arg3: memref<2x1x128xf32, #tpu.memory_space<vmem>>, %arg4: memref<2x1x128xf32, #tpu.memory_space<vmem>>, %arg5: memref<2x1x128xf32, #tpu.memory_space<vmem>>, %arg6: memref<8x128xf32, #tpu.memory_space<vmem>>) attributes {dimension_semantics = [#tpu.dimension_semantics<parallel>], iteration_bounds = array<i64: 1>, scalar_prefetch = 0 : i64, scratch_operands = 0 : i64, tpu.core_type = #tpu.core_type<tc>, window_params = [{transform_indices = @transform_0, window_bounds = array<i64: 8, 128>}, {pipeline_mode = #tpu.pipeline_mode<synchronous>, transform_indices = @transform_1, window_bounds = array<i64: 2, 128, 128>}, {pipeline_mode = #tpu.pipeline_mode<synchronous>, transform_indices = @transform_2, window_bounds = array<i64: 2, 1, 128>}, {pipeline_mode = #tpu.pipeline_mode<synchronous>, transform_indices = @transform_3, window_bounds = array<i64: 2, 1, 128>}, {pipeline_mode = #tpu.pipeline_mode<synchronous>, transform_indices = @transform_4, window_bounds = array<i64: 2, 1, 128>}, {transform_indices = @transform_5, window_bounds = array<i64: 8, 128>}]} {
    %c0 = arith.constant 0 : index
    %c0_0 = arith.constant 0 : index
    %0 = vector.load %arg1[%c0, %c0_0] : memref<8x128xf32, #tpu.memory_space<vmem>>, vector<8x128xf32>
    %1 = tpu.iota {dimensions = array<i32: 1>} : vector<8x128xi32>
    %c0_1 = arith.constant 0 : index
    %c0_2 = arith.constant 0 : index
    %c0_3 = arith.constant 0 : index
    %2 = vector.load %arg2[%c0_1, %c0_2, %c0_3] : memref<2x128x128xf32, #tpu.memory_space<vmem>>, vector<1x128x128xf32>
    %3 = vector.shape_cast %2 : vector<1x128x128xf32> to vector<128x128xf32>
    %cst = arith.constant dense<0.000000e+00> : vector<8x128xf32>
    %4 = tpu.matmul %0, %3, %cst {dimension_numbers = #tpu.dot_dimension_numbers<[1], [0], [0], [1], [0, 0, 1, 1], [], []>} : vector<8x128xf32>, vector<128x128xf32>, vector<8x128xf32> -> vector<8x128xf32>
    %c0_4 = arith.constant 0 : index
    %c0_5 = arith.constant 0 : index
    %c0_6 = arith.constant 0 : index
    %5 = vector.load %arg3[%c0_4, %c0_5, %c0_6] : memref<2x1x128xf32, #tpu.memory_space<vmem>>, vector<1x1x128xf32>
    %6 = vector.shape_cast %5 : vector<1x1x128xf32> to vector<1x128xf32>
    %7 = vector.broadcast %6 : vector<1x128xf32> to vector<8x128xf32>
    %8 = arith.addf %4, %7 : vector<8x128xf32>
    %cst_7 = arith.constant 0.000000e+00 : f32
    %9 = vector.broadcast %cst_7 : f32 to vector<8x128xf32>
    %10 = arith.maximumf %8, %9 : vector<8x128xf32>
    %c32_i32 = arith.constant 32 : i32
    %11 = vector.broadcast %c32_i32 : i32 to vector<8x128xi32>
    %12 = arith.cmpi slt, %1, %11 : vector<8x128xi32>
    %cst_8 = arith.constant 0.000000e+00 : f32
    %13 = vector.broadcast %cst_8 : f32 to vector<8x128xf32>
    %14 = arith.select %12, %10, %13 : vector<8x128xi1>, vector<8x128xf32>
    %cst_9 = arith.constant dense<0.000000e+00> : vector<8xf32>
    %15 = vector.multi_reduction <add>, %14, %cst_9 [1] : vector<8x128xf32> to vector<8xf32>
    %16 = vector.shape_cast %15 : vector<8xf32> to vector<8x1xf32>
    %cst_10 = arith.constant 3.125000e-02 : f32
    %17 = vector.broadcast %cst_10 : f32 to vector<8x1xf32>
    %18 = arith.mulf %16, %17 : vector<8x1xf32>
    %19 = vector.broadcast %18 : vector<8x1xf32> to vector<8x128xf32>
    %20 = arith.subf %10, %19 : vector<8x128xf32>
    %cst_11 = arith.constant 0.000000e+00 : f32
    %21 = vector.broadcast %cst_11 : f32 to vector<8x128xf32>
    %22 = arith.select %12, %20, %21 : vector<8x128xi1>, vector<8x128xf32>
    %23 = arith.mulf %22, %22 : vector<8x128xf32>
    %cst_12 = arith.constant dense<0.000000e+00> : vector<8xf32>
    %24 = vector.multi_reduction <add>, %23, %cst_12 [1] : vector<8x128xf32> to vector<8xf32>
    %25 = vector.shape_cast %24 : vector<8xf32> to vector<8x1xf32>
    %cst_13 = arith.constant 3.125000e-02 : f32
    %26 = vector.broadcast %cst_13 : f32 to vector<8x1xf32>
    %27 = arith.mulf %25, %26 : vector<8x1xf32>
    %cst_14 = arith.constant 9.99999974E-6 : f32
    %28 = vector.broadcast %cst_14 : f32 to vector<8x1xf32>
    %29 = arith.addf %27, %28 : vector<8x1xf32>
    %30 = math.rsqrt %29 : vector<8x1xf32>
    %31 = vector.broadcast %30 : vector<8x1xf32> to vector<8x128xf32>
    %32 = arith.mulf %22, %31 : vector<8x128xf32>
    %c0_15 = arith.constant 0 : index
    %c0_16 = arith.constant 0 : index
    %c0_17 = arith.constant 0 : index
    %33 = vector.load %arg4[%c0_15, %c0_16, %c0_17] : memref<2x1x128xf32, #tpu.memory_space<vmem>>, vector<1x1x128xf32>
    %34 = vector.shape_cast %33 : vector<1x1x128xf32> to vector<1x128xf32>
    %35 = vector.broadcast %34 : vector<1x128xf32> to vector<8x128xf32>
    %36 = arith.mulf %32, %35 : vector<8x128xf32>
    %c0_18 = arith.constant 0 : index
    %c0_19 = arith.constant 0 : index
    %c0_20 = arith.constant 0 : index
    %37 = vector.load %arg5[%c0_18, %c0_19, %c0_20] : memref<2x1x128xf32, #tpu.memory_space<vmem>>, vector<1x1x128xf32>
    %38 = vector.shape_cast %37 : vector<1x1x128xf32> to vector<1x128xf32>
    %39 = vector.broadcast %38 : vector<1x128xf32> to vector<8x128xf32>
    %40 = arith.addf %36, %39 : vector<8x128xf32>
    %c1 = arith.constant 1 : index
    %c0_21 = arith.constant 0 : index
    %c0_22 = arith.constant 0 : index
    %41 = vector.load %arg2[%c1, %c0_21, %c0_22] : memref<2x128x128xf32, #tpu.memory_space<vmem>>, vector<1x128x128xf32>
    %42 = vector.shape_cast %41 : vector<1x128x128xf32> to vector<128x128xf32>
    %cst_23 = arith.constant dense<0.000000e+00> : vector<8x128xf32>
    %43 = tpu.matmul %40, %42, %cst_23 {dimension_numbers = #tpu.dot_dimension_numbers<[1], [0], [0], [1], [0, 0, 1, 1], [], []>} : vector<8x128xf32>, vector<128x128xf32>, vector<8x128xf32> -> vector<8x128xf32>
    %c1_24 = arith.constant 1 : index
    %c0_25 = arith.constant 0 : index
    %c0_26 = arith.constant 0 : index
    %44 = vector.load %arg3[%c1_24, %c0_25, %c0_26] : memref<2x1x128xf32, #tpu.memory_space<vmem>>, vector<1x1x128xf32>
    %45 = vector.shape_cast %44 : vector<1x1x128xf32> to vector<1x128xf32>
    %46 = vector.broadcast %45 : vector<1x128xf32> to vector<8x128xf32>
    %47 = arith.addf %43, %46 : vector<8x128xf32>
    %cst_27 = arith.constant 0.000000e+00 : f32
    %48 = vector.broadcast %cst_27 : f32 to vector<8x128xf32>
    %49 = arith.maximumf %47, %48 : vector<8x128xf32>
    %c64_i32 = arith.constant 64 : i32
    %50 = vector.broadcast %c64_i32 : i32 to vector<8x128xi32>
    %51 = arith.cmpi slt, %1, %50 : vector<8x128xi32>
    %cst_28 = arith.constant 0.000000e+00 : f32
    %52 = vector.broadcast %cst_28 : f32 to vector<8x128xf32>
    %53 = arith.select %51, %49, %52 : vector<8x128xi1>, vector<8x128xf32>
    %cst_29 = arith.constant dense<0.000000e+00> : vector<8xf32>
    %54 = vector.multi_reduction <add>, %53, %cst_29 [1] : vector<8x128xf32> to vector<8xf32>
    %55 = vector.shape_cast %54 : vector<8xf32> to vector<8x1xf32>
    %cst_30 = arith.constant 1.562500e-02 : f32
    %56 = vector.broadcast %cst_30 : f32 to vector<8x1xf32>
    %57 = arith.mulf %55, %56 : vector<8x1xf32>
    %58 = vector.broadcast %57 : vector<8x1xf32> to vector<8x128xf32>
    %59 = arith.subf %49, %58 : vector<8x128xf32>
    %cst_31 = arith.constant 0.000000e+00 : f32
    %60 = vector.broadcast %cst_31 : f32 to vector<8x128xf32>
    %61 = arith.select %51, %59, %60 : vector<8x128xi1>, vector<8x128xf32>
    %62 = arith.mulf %61, %61 : vector<8x128xf32>
    %cst_32 = arith.constant dense<0.000000e+00> : vector<8xf32>
    %63 = vector.multi_reduction <add>, %62, %cst_32 [1] : vector<8x128xf32> to vector<8xf32>
    %64 = vector.shape_cast %63 : vector<8xf32> to vector<8x1xf32>
    %cst_33 = arith.constant 1.562500e-02 : f32
    %65 = vector.broadcast %cst_33 : f32 to vector<8x1xf32>
    %66 = arith.mulf %64, %65 : vector<8x1xf32>
    %cst_34 = arith.constant 9.99999974E-6 : f32
    %67 = vector.broadcast %cst_34 : f32 to vector<8x1xf32>
    %68 = arith.addf %66, %67 : vector<8x1xf32>
    %69 = math.rsqrt %68 : vector<8x1xf32>
    %70 = vector.broadcast %69 : vector<8x1xf32> to vector<8x128xf32>
    %71 = arith.mulf %61, %70 : vector<8x128xf32>
    %c1_35 = arith.constant 1 : index
    %c0_36 = arith.constant 0 : index
    %c0_37 = arith.constant 0 : index
    %72 = vector.load %arg4[%c1_35, %c0_36, %c0_37] : memref<2x1x128xf32, #tpu.memory_space<vmem>>, vector<1x1x128xf32>
    %73 = vector.shape_cast %72 : vector<1x1x128xf32> to vector<1x128xf32>
    %74 = vector.broadcast %73 : vector<1x128xf32> to vector<8x128xf32>
    %75 = arith.mulf %71, %74 : vector<8x128xf32>
    %c1_38 = arith.constant 1 : index
    %c0_39 = arith.constant 0 : index
    %c0_40 = arith.constant 0 : index
    %76 = vector.load %arg5[%c1_38, %c0_39, %c0_40] : memref<2x1x128xf32, #tpu.memory_space<vmem>>, vector<1x1x128xf32>
    %77 = vector.shape_cast %76 : vector<1x1x128xf32> to vector<1x128xf32>
    %78 = vector.broadcast %77 : vector<1x128xf32> to vector<8x128xf32>
    %79 = arith.addf %75, %78 : vector<8x128xf32>
    %c0_41 = arith.constant 0 : index
    %c0_42 = arith.constant 0 : index
    %80 = vector.load %arg6[%c0_41, %c0_42] : memref<8x128xf32, #tpu.memory_space<vmem>>, vector<8x128xf32>
    tpu.vector_store %arg6[%c0_41, %c0_42], %79 {strides = array<i32>} : memref<8x128xf32, #tpu.memory_space<vmem>>, vector<8x128xf32>,
    return
  }
  func.func @transform_0(%arg0: i32) -> (i32, i32) {
    %c0_i32 = arith.constant 0 : i32
    %c0_i32_0 = arith.constant 0 : i32
    return %arg0, %c0_i32 : i32, i32
  }
  func.func @transform_1(%arg0: i32) -> (i32, i32, i32) {
    %c0_i32 = arith.constant 0 : i32
    %c0_i32_0 = arith.constant 0 : i32
    %c0_i32_1 = arith.constant 0 : i32
    %c0_i32_2 = arith.constant 0 : i32
    return %c0_i32, %c0_i32_0, %c0_i32_1 : i32, i32, i32
  }
  func.func @transform_2(%arg0: i32) -> (i32, i32, i32) {
    %c0_i32 = arith.constant 0 : i32
    %c0_i32_0 = arith.constant 0 : i32
    %c0_i32_1 = arith.constant 0 : i32
    %c0_i32_2 = arith.constant 0 : i32
    return %c0_i32, %c0_i32_0, %c0_i32_1 : i32, i32, i32
  }
  func.func @transform_3(%arg0: i32) -> (i32, i32, i32) {
    %c0_i32 = arith.constant 0 : i32
    %c0_i32_0 = arith.constant 0 : i32
    %c0_i32_1 = arith.constant 0 : i32
    %c0_i32_2 = arith.constant 0 : i32
    return %c0_i32, %c0_i32_0, %c0_i32_1 : i32, i32, i32
  }
  func.func @transform_4(%arg0: i32) -> (i32, i32, i32) {
    %c0_i32 = arith.constant 0 : i32
    %c0_i32_0 = arith.constant 0 : i32
    %c0_i32_1 = arith.constant 0 : i32
    %c0_i32_2 = arith.constant 0 : i32
    return %c0_i32, %c0_i32_0, %c0_i32_1 : i32, i32, i32
  }
  func.func @transform_5(%arg0: i32) -> (i32, i32) {
    %c0_i32 = arith.constant 0 : i32
    %c0_i32_0 = arith.constant 0 : i32
    return %arg0, %c0_i32 : i32, i32
  }
}

</mosaic_0001>

<llo_original>
// kernel: tpu_custom_call.1
$region0: #{tpu_custom_call.1}
  #allocation0 [shape = 'u32[]', space=smem, size = 0x4, offset = 0x4, fixed_abs, tag = 'smem constant byte address 0x4 - core index']
  #allocation1 [shape = 'u32[144,128]{1,0:T(1,128)}', space=vmem, size = 0x12000, scoped, tag = 'internal scratch']
  %s0 = inlined_call_operand.hbm [shape: f32[8,128], index: 0, kind: input, shape index: {}]
  %s1 = inlined_call_operand.hbm [shape: f32[2,128,128], index: 1, kind: input, shape index: {}]
  %s2 = inlined_call_operand.vmem [shape: f32[2,1,128], index: 2, kind: input, shape index: {}]
  %s3 = inlined_call_operand.vmem [shape: f32[2,1,128], index: 3, kind: input, shape index: {}]
  %s4 = inlined_call_operand.vmem [shape: f32[2,1,128], index: 4, kind: input, shape index: {}]
  %s5 = inlined_call_operand.hbm [shape: f32[8,128], index: 5, kind: output, shape index: {}]
  %s6 = sld [smem:[#allocation0]]
  $region38: #{tpu_custom_call.1} parent=0
    _
  %s8 = ssub.s32 1, %s6
  %s9 = scalar_select 0, %s8, %s6
  $region1: #{tpu_custom_call.1} parent=0
    #allocation2 [shape = 'u8[4096]{0}', space=vmem, size = 0x1000, scoped, tag = 'input window, operand 0, single buffered']
    #allocation3 [shape = 's32[1]{0}', space=sflag, size = 0x4, scoped, tag = 'scoped memory for tpu_custom_call.1']
    #allocation4 [shape = 's32[1]{0}', space=sflag, size = 0x4, scoped, tag = 'scoped memory for tpu_custom_call.1']
    #allocation5 [shape = 'u8[131072]{0}', space=vmem, size = 0x20000, scoped, tag = 'input window, operand 1, single buffered']
    #allocation6 [shape = 's32[1]{0}', space=sflag, size = 0x4, scoped, tag = 'scoped memory for tpu_custom_call.1']
    #allocation7 [shape = 'u8[4096]{0}', space=vmem, size = 0x1000, scoped, tag = 'output window, operand 0, single buffered']
    %10 = vsyncpa [#allocation3], 0
    %11 = vsyncpa [#allocation6], 0
    %12 = vsyncpa [#allocation4], 0
    // Predicated region
    $region2: #{tpu_custom_call.1} parent=1 // pred_check
      _
    $region3: #{tpu_custom_call.1} parent=1 // pred_check_branch
      %14 = sbr.rel (0) target = $region5
    $region4: #{tpu_custom_call.1} parent=1 // pred_region
      %s16 = ssub.s32 128, 128
      %17 = vsyncadd [#allocation3], %s16
      %s19 = sshll.u32 [#allocation2], 4
      %s20 = int_to_ptr.vmem [resolvable:$true] %s19
      %22 = dma.hbm_to_vmem [thread:$0]  %s0, 128, %s20, [#allocation3]
    $region5: #{tpu_custom_call.1} parent=1 // pred_fallthru
      _
    // Predicated region
    $region6: #{tpu_custom_call.1} parent=1 // pred_check
      _
    $region7: #{tpu_custom_call.1} parent=1 // pred_check_branch
      %24 = sbr.rel (0) target = $region9
    $region8: #{tpu_custom_call.1} parent=1 // pred_region
      %s26 = ssub.s32 4096, 4096
      %27 = vsyncadd [#allocation6], %s26
      %s28 = sshll.u32 [#allocation5], 4
      %s29 = int_to_ptr.vmem [resolvable:$true] %s28
      %34 = dma.hbm_to_vmem [thread:$0]  %s1, 4096, %s29, [#allocation6], 128, 128, 8
    $region9: #{tpu_custom_call.1} parent=1 // pred_fallthru
      _
    // Predicated region
    $region10: #{tpu_custom_call.1} parent=1 // pred_check
      _
    $region11: #{tpu_custom_call.1} parent=1 // pred_check_branch
      %36 = sbr.rel (0) target = $region13
    $region12: #{tpu_custom_call.1} parent=1 // pred_region
      _
    $region13: #{tpu_custom_call.1} parent=1 // pred_fallthru
      _
    // Predicated region
    $region14: #{tpu_custom_call.1} parent=1 // pred_check
      _
    $region15: #{tpu_custom_call.1} parent=1 // pred_check_branch
      %38 = sbr.rel (0) target = $region17
    $region16: #{tpu_custom_call.1} parent=1 // pred_region
      _
    $region17: #{tpu_custom_call.1} parent=1 // pred_fallthru
      _
    // Predicated region
    $region18: #{tpu_custom_call.1} parent=1 // pred_check
      _
    $region19: #{tpu_custom_call.1} parent=1 // pred_check_branch
      %40 = sbr.rel (0) target = $region21
    $region20: #{tpu_custom_call.1} parent=1 // pred_region
      _
    $region21: #{tpu_custom_call.1} parent=1 // pred_fallthru
      _
    // Predicated region
    $region22: #{tpu_custom_call.1} parent=1 // pred_check
      _
    $region23: #{tpu_custom_call.1} parent=1 // pred_check_branch
      %42 = sbr.rel (0) target = $region25
    $region24: #{tpu_custom_call.1} parent=1 // pred_region
      %43 = dma.done [#allocation3], 128
    $region25: #{tpu_custom_call.1} parent=1 // pred_fallthru
      _
    // Predicated region
    $region26: #{tpu_custom_call.1} parent=1 // pred_check
      _
    $region27: #{tpu_custom_call.1} parent=1 // pred_check_branch
      %45 = sbr.rel (0) target = $region29
    $region28: #{tpu_custom_call.1} parent=1 // pred_region
      %46 = dma.done [#allocation6], 4096
    $region29: #{tpu_custom_call.1} parent=1 // pred_fallthru
      _
    %v47 = vld [vmem:[#allocation2] sm:$0xff]
    %v48 = vlaneseq
    %v49 = vand.u32 %v48, 127
    %v50 = vld [vmem:[#allocation5] sm:$0xff]
    %v51 = vld [vmem:[#allocation5 + $0x8] sm:$0xff]
    %v52 = vld [vmem:[#allocation5 + $0x10] sm:$0xff]
    %v53 = vld [vmem:[#allocation5 + $0x18] sm:$0xff]
    %v54 = vld [vmem:[#allocation5 + $0x20] sm:$0xff]
    %v55 = vld [vmem:[#allocation5 + $0x28] sm:$0xff]
    %v56 = vld [vmem:[#allocation5 + $0x30] sm:$0xff]
    %v57 = vld [vmem:[#allocation5 + $0x38] sm:$0xff]
    %v58 = vld [vmem:[#allocation5 + $0x40] sm:$0xff]
    %v59 = vld [vmem:[#allocation5 + $0x48] sm:$0xff]
    %v60 = vld [vmem:[#allocation5 + $0x50] sm:$0xff]
    %v61 = vld [vmem:[#allocation5 + $0x58] sm:$0xff]
    %v62 = vld [vmem:[#allocation5 + $0x60] sm:$0xff]
    %v63 = vld [vmem:[#allocation5 + $0x68] sm:$0xff]
    %v64 = vld [vmem:[#allocation5 + $0x70] sm:$0xff]
    %v65 = vld [vmem:[#allocation5 + $0x78] sm:$0xff]
    %v66 = vld [vmem:[%s2] sm:$0x1]
    %v68 = vlaneseq
    %v69 = vshrl.u32 %v68, 7
    %v70 = vsub.s32 0, %v69
    %v71 = vrot.slane %v66, %v70
    %73 = vmatprep.subr.mxu0 0.0
    %74 = vmatpush1.msra.mxu0 %v50
    %75 = vmatprep.subr.mxu0 0.0
    %76 = vmatpush1.msra.mxu0 %v51
    %77 = vmatprep.subr.mxu0 0.0
    %78 = vmatpush1.msra.mxu0 %v52
    %79 = vmatprep.subr.mxu0 0.0
    %80 = vmatpush1.msra.mxu0 %v53
    %81 = vmatprep.subr.mxu0 0.0
    %82 = vmatpush1.msra.mxu0 %v54
    %83 = vmatprep.subr.mxu0 0.0
    %84 = vmatpush1.msra.mxu0 %v55
    %85 = vmatprep.subr.mxu0 0.0
    %86 = vmatpush1.msra.mxu0 %v56
    %87 = vmatprep.subr.mxu0 0.0
    %88 = vmatpush1.msra.mxu0 %v57
    %89 = vmatprep.subr.mxu0 0.0
    %90 = vmatpush1.msra.mxu0 %v58
    %91 = vmatprep.subr.mxu0 0.0
    %92 = vmatpush1.msra.mxu0 %v59
    %93 = vmatprep.subr.mxu0 0.0
    %94 = vmatpush1.msra.mxu0 %v60
    %95 = vmatprep.subr.mxu0 0.0
    %96 = vmatpush1.msra.mxu0 %v61
    %97 = vmatprep.subr.mxu0 0.0
    %98 = vmatpush1.msra.mxu0 %v62
    %99 = vmatprep.subr.mxu0 0.0
    %100 = vmatpush1.msra.mxu0 %v63
    %101 = vmatprep.subr.mxu0 0.0
    %102 = vmatpush1.msra.mxu0 %v64
    %103 = vmatprep.subr.mxu0 0.0
    %104 = vmatpush1.msra.mxu0 %v65
    %105 = vmatprep.subr.mxu0 0.0
    %106 = vmatpush1.msra.mxu0 0.0
    %107 = vmatprep.subr.mxu0 0.0
    %108 = vmatpush1.msra.mxu0 0.0
    %109 = vmatprep.subr.mxu0 0.0
    %110 = vmatpush1.msra.mxu0 0.0
    %111 = vmatprep.subr.mxu0 0.0
    %112 = vmatpush1.msra.mxu0 0.0
    %113 = vmatprep.subr.mxu0 0.0
    %114 = vmatpush1.msra.mxu0 0.0
    %115 = vmatprep.subr.mxu0 0.0
    %116 = vmatpush1.msra.mxu0 0.0
    %117 = vmatprep.subr.mxu0 0.0
    %118 = vmatpush1.msra.mxu0 0.0
    %119 = vmatprep.subr.mxu0 0.0
    %120 = vmatpush1.msra.mxu0 0.0
    %121 = vmatprep.subr.mxu0 0.0
    %122 = vmatpush1.msra.mxu0 0.0
    %123 = vmatprep.subr.mxu0 0.0
    %124 = vmatpush1.msra.mxu0 0.0
    %125 = vmatprep.subr.mxu0 0.0
    %126 = vmatpush1.msra.mxu0 0.0
    %127 = vmatprep.subr.mxu0 0.0
    %128 = vmatpush1.msra.mxu0 0.0
    %129 = vmatprep.subr.mxu0 0.0
    %130 = vmatpush1.msra.mxu0 0.0
    %131 = vmatprep.subr.mxu0 0.0
    %132 = vmatpush1.msra.mxu0 0.0
    %133 = vmatprep.subr.mxu0 0.0
    %134 = vmatpush1.msra.mxu0 0.0
    %135 = vmatprep.subr.mxu0 0.0
    %136 = vmatpush1.msra.mxu0 0.0
    %137 = vmatprep.mubr.f32.mxu0 0.0
    %138 = vmatmul.mubr.f32.gmra.mrb[0].mxu0 %v47
    %v139 = vpop.f32.mrb[0].mxu0
    %v140 = vadd.f32 %v71, %v139
    %v141 = vpop.f32.mrb[0].mxu0
    %142 = vdwg.mxu0
    %v143 = vmax.f32 %v140, 0.0
    %vm144 = vcmp.lt.s32.totalorder %v49, 32
    %v145 = vsel %vm144, %v143, 0.0
    %146 = vadd.xlane.f32.xlu0 %v145
    %v147 = vpop.xlane.xlu0 %146
    %v148 = vmul.f32 %v147, 0.03125
    %v149 = vsub.f32 %v143, %v148
    %v150 = vsel %vm144, %v149, 0.0
    %v151 = vmul.f32 %v150, %v150
    %152 = vadd.xlane.f32.xlu0 %v151
    %v153 = vpop.xlane.xlu0 %152
    %v154 = vmul.f32 %v153, 0.03125
    %v155 = vadd.f32 %v154, 1e-05
    %v156 = vrsqrt.pop %v155
    %v157 = vmul.f32 %v150, %v156
    %v158 = vld [vmem:[%s3] sm:$0x1]
    %v160 = vlaneseq
    %v161 = vshrl.u32 %v160, 7
    %v162 = vsub.s32 0, %v161
    %v163 = vrot.slane %v158, %v162
    %v165 = vmul.f32 %v157, %v163
    %v166 = vld [vmem:[%s4] sm:$0x1]
    %v168 = vlaneseq
    %v169 = vshrl.u32 %v168, 7
    %v170 = vsub.s32 0, %v169
    %v171 = vrot.slane %v166, %v170
    %v173 = vadd.f32 %v165, %v171
    %s174 = scalar_lea.vmem [#allocation5], 128
    %v175 = vld [vmem:[%s174] sm:$0xff]
    %v176 = vld [vmem:[%s174 + $0x8] sm:$0xff]
    %v177 = vld [vmem:[%s174 + $0x10] sm:$0xff]
    %v178 = vld [vmem:[%s174 + $0x18] sm:$0xff]
    %v179 = vld [vmem:[%s174 + $0x20] sm:$0xff]
    %v180 = vld [vmem:[%s174 + $0x28] sm:$0xff]
    %v181 = vld [vmem:[%s174 + $0x30] sm:$0xff]
    %v182 = vld [vmem:[%s174 + $0x38] sm:$0xff]
    %v183 = vld [vmem:[%s174 + $0x40] sm:$0xff]
    %v184 = vld [vmem:[%s174 + $0x48] sm:$0xff]
    %v185 = vld [vmem:[%s174 + $0x50] sm:$0xff]
    %v186 = vld [vmem:[%s174 + $0x58] sm:$0xff]
    %v187 = vld [vmem:[%s174 + $0x60] sm:$0xff]
    %v188 = vld [vmem:[%s174 + $0x68] sm:$0xff]
    %v189 = vld [vmem:[%s174 + $0x70] sm:$0xff]
    %v190 = vld [vmem:[%s174 + $0x78] sm:$0xff]
    %s191 = scalar_lea.vmem %s2, 1
    %v192 = vld [vmem:[%s191] sm:$0x1]
    %v194 = vlaneseq
    %v195 = vshrl.u32 %v194, 7
    %v196 = vsub.s32 0, %v195
    %v197 = vrot.slane %v192, %v196
    %199 = vmatprep.subr.mxu0 0.0
    %200 = vmatpush1.msra.mxu0 %v175
    %201 = vmatprep.subr.mxu0 0.0
    %202 = vmatpush1.msra.mxu0 %v176
    %203 = vmatprep.subr.mxu0 0.0
    %204 = vmatpush1.msra.mxu0 %v177
    %205 = vmatprep.subr.mxu0 0.0
    %206 = vmatpush1.msra.mxu0 %v178
    %207 = vmatprep.subr.mxu0 0.0
    %208 = vmatpush1.msra.mxu0 %v179
    %209 = vmatprep.subr.mxu0 0.0
    %210 = vmatpush1.msra.mxu0 %v180
    %211 = vmatprep.subr.mxu0 0.0
    %212 = vmatpush1.msra.mxu0 %v181
    %213 = vmatprep.subr.mxu0 0.0
    %214 = vmatpush1.msra.mxu0 %v182
    %215 = vmatprep.subr.mxu0 0.0
    %216 = vmatpush1.msra.mxu0 %v183
    %217 = vmatprep.subr.mxu0 0.0
    %218 = vmatpush1.msra.mxu0 %v184
    %219 = vmatprep.subr.mxu0 0.0
    %220 = vmatpush1.msra.mxu0 %v185
    %221 = vmatprep.subr.mxu0 0.0
    %222 = vmatpush1.msra.mxu0 %v186
    %223 = vmatprep.subr.mxu0 0.0
    %224 = vmatpush1.msra.mxu0 %v187
    %225 = vmatprep.subr.mxu0 0.0
    %226 = vmatpush1.msra.mxu0 %v188
    %227 = vmatprep.subr.mxu0 0.0
    %228 = vmatpush1.msra.mxu0 %v189
    %229 = vmatprep.subr.mxu0 0.0
    %230 = vmatpush1.msra.mxu0 %v190
    %231 = vmatprep.subr.mxu0 0.0
    %232 = vmatpush1.msra.mxu0 0.0
    %233 = vmatprep.subr.mxu0 0.0
    %234 = vmatpush1.msra.mxu0 0.0
    %235 = vmatprep.subr.mxu0 0.0
    %236 = vmatpush1.msra.mxu0 0.0
    %237 = vmatprep.subr.mxu0 0.0
    %238 = vmatpush1.msra.mxu0 0.0
    %239 = vmatprep.subr.mxu0 0.0
    %240 = vmatpush1.msra.mxu0 0.0
    %241 = vmatprep.subr.mxu0 0.0
    %242 = vmatpush1.msra.mxu0 0.0
    %243 = vmatprep.subr.mxu0 0.0
    %244 = vmatpush1.msra.mxu0 0.0
    %245 = vmatprep.subr.mxu0 0.0
    %246 = vmatpush1.msra.mxu0 0.0
    %247 = vmatprep.subr.mxu0 0.0
    %248 = vmatpush1.msra.mxu0 0.0
    %249 = vmatprep.subr.mxu0 0.0
    %250 = vmatpush1.msra.mxu0 0.0
    %251 = vmatprep.subr.mxu0 0.0
    %252 = vmatpush1.msra.mxu0 0.0
    %253 = vmatprep.subr.mxu0 0.0
    %254 = vmatpush1.msra.mxu0 0.0
    %255 = vmatprep.subr.mxu0 0.0
    %256 = vmatpush1.msra.mxu0 0.0
    %257 = vmatprep.subr.mxu0 0.0
    %258 = vmatpush1.msra.mxu0 0.0
    %259 = vmatprep.subr.mxu0 0.0
    %260 = vmatpush1.msra.mxu0 0.0
    %261 = vmatprep.subr.mxu0 0.0
    %262 = vmatpush1.msra.mxu0 0.0
    %263 = vmatprep.mubr.f32.mxu0 0.0
    %264 = vmatmul.mubr.f32.gmra.mrb[0].mxu0 %v173
    %v265 = vpop.f32.mrb[0].mxu0
    %v266 = vadd.f32 %v197, %v265
    %v267 = vpop.f32.mrb[0].mxu0
    %268 = vdwg.mxu0
    %v269 = vmax.f32 %v266, 0.0
    %vm270 = vcmp.lt.s32.totalorder %v49, 64
    %v271 = vsel %vm270, %v269, 0.0
    %272 = vadd.xlane.f32.xlu0 %v271
    %v273 = vpop.xlane.xlu0 %272
    %v274 = vmul.f32 %v273, 0.015625
    %v275 = vsub.f32 %v269, %v274
    %v276 = vsel %vm270, %v275, 0.0
    %v277 = vmul.f32 %v276, %v276
    %278 = vadd.xlane.f32.xlu0 %v277
    %v279 = vpop.xlane.xlu0 %278
    %v280 = vmul.f32 %v279, 0.015625
    %v281 = vadd.f32 %v280, 1e-05
    %v282 = vrsqrt.pop %v281
    %v283 = vmul.f32 %v276, %v282
    %s284 = scalar_lea.vmem %s3, 1
    %v285 = vld [vmem:[%s284] sm:$0x1]
    %v287 = vlaneseq
    %v288 = vshrl.u32 %v287, 7
    %v289 = vsub.s32 0, %v288
    %v290 = vrot.slane %v285, %v289
    %v292 = vmul.f32 %v283, %v290
    %s293 = scalar_lea.vmem %s4, 1
    %v294 = vld [vmem:[%s293] sm:$0x1]
    %v296 = vlaneseq
    %v297 = vshrl.u32 %v296, 7
    %v298 = vsub.s32 0, %v297
    %v299 = vrot.slane %v294, %v298
    %v301 = vadd.f32 %v292, %v299
    %302 = vst [vmem:[#allocation7] sm:$0xff] %v301
    // Predicated region
    $region30: #{tpu_custom_call.1} parent=1 // pred_check
      _
    $region31: #{tpu_custom_call.1} parent=1 // pred_check_branch
      %304 = sbr.rel (0) target = $region33
    $region32: #{tpu_custom_call.1} parent=1 // pred_region
      %s306 = ssub.s32 128, 128
      %307 = vsyncadd [#allocation4], %s306
      %s309 = sshll.u32 [#allocation7], 4
      %s310 = int_to_ptr.vmem [resolvable:$true] %s309
      %312 = dma.vmem_to_hbm [thread:$0]  %s310, 128, %s5, [#allocation4]
    $region33: #{tpu_custom_call.1} parent=1 // pred_fallthru
      _
    // Predicated region
    $region34: #{tpu_custom_call.1} parent=1 // pred_check
      _
    $region35: #{tpu_custom_call.1} parent=1 // pred_check_branch
      %314 = sbr.rel (0) target = $region37
    $region36: #{tpu_custom_call.1} parent=1 // pred_region
      %315 = dma.done [#allocation4], 128
    $region37: #{tpu_custom_call.1} parent=1 // pred_fallthru
      _
    %316 = vsyncpa [#allocation3], 1
    %317 = vsyncpa [#allocation6], 1
    %318 = vsyncpa [#allocation4], 1

</llo_original>
